<compile_context>
chip_gen: v5e
topology: v5e:2x2
jax: 0.10.0
libtpu: 0.0.40
codegen_flags: <defaults>
</compile_context>

<pallas_src>
import functools

import jax
import jax.numpy as jnp
from jax.experimental import pallas as pl
from jax.experimental.pallas import tpu as pltpu


_BLOCK_BYTES_BUDGET = 4 * 1024 * 1024   # per input block (x2 for double buffering)
_MIN_PALLAS_BYTES = 1 << 20             # below this, a fused XLA reduce wins
_VMEM_LIMIT_BYTES = 32 * 1024 * 1024    # explicit: lifts v5e's 16 MiB default, safe on v7x


def _pick_tile(size, align, cap):
    """Largest multiple of `align` that evenly divides `size` and is <= cap.

    Falls back to the full `size` (a full-dim block is always legal) when
    `size` is not a multiple of `align`.
    """
    if size % align != 0:
        return size
    best = align
    t = align
    limit = min(size, cap)
    while t <= limit:
        if size % t == 0:
            best = t
        t += align
    return best


# ----------------------------------------------------------------------------
# Case A: reduction axis is NOT the last axis.
# x is reshaped (free, contiguous regroup) to (P, N, L); reduce over axis 1,
# which is the sublane axis of each (tp, tn, tl) block (VPU-friendly).
# ----------------------------------------------------------------------------
def _mean_mid_kernel(x_ref, o_ref, acc_ref, *, inv_n):
    k = pl.program_id(2)

    @pl.when(k == 0)
    def _init():
        acc_ref[...] = jnp.zeros_like(acc_ref)

    x = x_ref[...].astype(jnp.float32)
    acc_ref[...] += jnp.sum(x, axis=1)          # sublane-axis reduce

    @pl.when(k == pl.num_programs(2) - 1)
    def _finalize():
        o_ref[...] = (acc_ref[...] * inv_n).astype(o_ref.dtype)


def _mean_mid_axis(x3, block_p=None, block_n=None, block_l=None):
    P, N, L = x3.shape
    itemsize = x3.dtype.itemsize

    tl = block_l or _pick_tile(L, 128, 512)
    tn = block_n or _pick_tile(N, 8, max(8, _BLOCK_BYTES_BUDGET // (8 * tl * itemsize)))
    tp = block_p or _pick_tile(P, 8, max(8, _BLOCK_BYTES_BUDGET // (tn * tl * itemsize)))

    grid = (P // tp, L // tl, N // tn)          # reduction axis last

    kernel = functools.partial(_mean_mid_kernel, inv_n=1.0 / float(N))
    return pl.pallas_call(
        kernel,
        out_shape=jax.ShapeDtypeStruct((P, L), x3.dtype),
        grid=grid,
        in_specs=[pl.BlockSpec((tp, tn, tl), lambda i, j, k: (i, k, j))],
        out_specs=pl.BlockSpec((tp, tl), lambda i, j, k: (i, j)),
        scratch_shapes=[pltpu.VMEM((tp, tl), jnp.float32)],
        compiler_params=pltpu.CompilerParams(
            dimension_semantics=("parallel", "parallel", "arbitrary"),
            vmem_limit_bytes=_VMEM_LIMIT_BYTES,
        ),
        cost_estimate=pl.CostEstimate(
            flops=P * N * L,
            transcendentals=0,
            bytes_accessed=(P * N * L + P * L) * itemsize,
        ),
    )(x3)


# ----------------------------------------------------------------------------
# Case B: reduction axis IS the last (lane) axis.
# x is reshaped to (P, N); the lane reduction is done on the otherwise-idle
# MXU by contracting with a ones vector (avoids a long XLU lane-reduce chain).
# ----------------------------------------------------------------------------
def _mean_last_kernel(x_ref, o_ref, acc_ref, *, inv_n):
    k = pl.program_id(1)

    @pl.when(k == 0)
    def _init():
        acc_ref[...] = jnp.zeros_like(acc_ref)

    x = x_ref[...].astype(jnp.float32)
    ones = jnp.ones((x.shape[1], 1), jnp.float32)
    acc_ref[...] += jnp.dot(x, ones, preferred_element_type=jnp.float32)

    @pl.when(k == pl.num_programs(1) - 1)
    def _finalize():
        o_ref[...] = (acc_ref[...] * inv_n).astype(o_ref.dtype)


def _mean_last_axis(x2, block_p=None, block_n=None):
    P, N = x2.shape
    itemsize = x2.dtype.itemsize

    tn = block_n or _pick_tile(N, 128, 2048)
    tp = block_p or _pick_tile(P, 8, max(8, _BLOCK_BYTES_BUDGET // (tn * itemsize)))

    grid = (P // tp, N // tn)                   # reduction axis last

    kernel = functools.partial(_mean_last_kernel, inv_n=1.0 / float(N))
    return pl.pallas_call(
        kernel,
        out_shape=jax.ShapeDtypeStruct((P, 1), x2.dtype),
        grid=grid,
        in_specs=[pl.BlockSpec((tp, tn), lambda i, k: (i, k))],
        out_specs=pl.BlockSpec((tp, 1), lambda i, k: (i, 0)),
        scratch_shapes=[pltpu.VMEM((tp, 1), jnp.float32)],
        compiler_params=pltpu.CompilerParams(
            dimension_semantics=("parallel", "arbitrary"),
            vmem_limit_bytes=_VMEM_LIMIT_BYTES,
        ),
        cost_estimate=pl.CostEstimate(
            flops=2 * P * N,
            transcendentals=0,
            bytes_accessed=(P * N + P) * itemsize,
        ),
    )(x2)


# ----------------------------------------------------------------------------
# Public wrapper: torch.mean(x, dim, keepdim) semantics.
# ----------------------------------------------------------------------------
def mean_layer(x, dim, keepdim=False, *, force_pallas=False,
               block_p=None, block_n=None, block_l=None):
    ndim = x.ndim
    if ndim == 0:
        return x
    dim = dim % ndim
    n = x.shape[dim]
    reduced_shape = x.shape[:dim] + x.shape[dim + 1:]

    # Tiny inputs: kernel launch + DMA setup dominate; let XLA fuse it.
    if not force_pallas and x.size * x.dtype.itemsize < _MIN_PALLAS_BYTES:
        return jnp.mean(x, axis=dim, keepdims=keepdim)

    if dim == ndim - 1:
        out2 = _mean_last_axis(x.reshape(-1, n), block_p, block_n)        # (P, 1)
    else:
        P = 1
        for s in x.shape[:dim]:
            P *= s
        L = 1
        for s in x.shape[dim + 1:]:
            L *= s
        out2 = _mean_mid_axis(x.reshape(P, n, L), block_p, block_n, block_l)  # (P, L)
    # TODO(synk): huge shapes whose tiled dims are not multiples of (8,128)
    # fall back to full-dim blocks and may exceed the VMEM budget.

    out = out2.reshape(reduced_shape)
    if keepdim:
        out = jnp.expand_dims(out, dim)
    return out


if __name__ == "__main__":
    key = jax.random.PRNGKey(0)
    # Shapes consistent with the module's usage: (batch, seq, hidden)
    B, S, H = 2, 8, 32
    x = jax.random.normal(key, (B, S, H), dtype=jnp.float32)

    # 1) MeanLayer(dim=1): reduce over the sequence axis (the module's usage).
    out = jax.block_until_ready(mean_layer(x, dim=1, keepdim=False, force_pallas=True))
    ref = jnp.mean(x, axis=1)
    assert out.shape == ref.shape, (out.shape, ref.shape)
    assert jnp.allclose(out, ref, atol=1e-5, rtol=1e-5)

    # 2) keepdim=True
    out_kd = jax.block_until_ready(mean_layer(x, dim=1, keepdim=True, force_pallas=True))
    ref_kd = jnp.mean(x, axis=1, keepdims=True)
    assert out_kd.shape == ref_kd.shape
    assert jnp.allclose(out_kd, ref_kd, atol=1e-5, rtol=1e-5)

    # 3) Reduction over the last (lane) axis -> MXU ones-contraction path.
    out_last = jax.block_until_ready(mean_layer(x, dim=-1, force_pallas=True))
    ref_last = jnp.mean(x, axis=-1)
    assert out_last.shape == ref_last.shape
    assert jnp.allclose(out_last, ref_last, atol=1e-5, rtol=1e-5)

    # 4) Lane-dense, multi-block case exercising the tiled grid and the f32
    #    accumulator across several reduction-axis grid steps.
    x_big = jax.random.normal(jax.random.PRNGKey(1), (16, 64, 256), dtype=jnp.float32)
    out_big = jax.block_until_ready(
        mean_layer(x_big, dim=1, force_pallas=True, block_p=8, block_n=16, block_l=128))
    ref_big = jnp.mean(x_big, axis=1)
    assert out_big.shape == ref_big.shape
    assert jnp.allclose(out_big, ref_big, atol=1e-4, rtol=1e-5)

    # 5) dim=0 (reduction axis still lands on the sublane axis, P == 1).
    out0 = jax.block_until_ready(mean_layer(x, dim=0, force_pallas=True))
    ref0 = jnp.mean(x, axis=0)
    assert out0.shape == ref0.shape
    assert jnp.allclose(out0, ref0, atol=1e-5, rtol=1e-5)

    print("KERNEL_OK")
</pallas_src>

<mosaic_0001>
module attributes {stable_mosaic.version = 11 : i64} {
  func.func @_mean_mid_kernel(%arg0: i32, %arg1: i32, %arg2: i32, %arg3: memref<2x8x32xf32, #tpu.memory_space<vmem>>, %arg4: memref<2x32xf32, #tpu.memory_space<vmem>>, %arg5: memref<2x32xf32, #tpu.memory_space<vmem>>) attributes {dimension_semantics = [#tpu.dimension_semantics<parallel>, #tpu.dimension_semantics<parallel>, #tpu.dimension_semantics<arbitrary>], iteration_bounds = array<i64: 1, 1, 1>, scalar_prefetch = 0 : i64, scratch_operands = 1 : i64, tpu.core_type = #tpu.core_type<tc>, window_params = [{transform_indices = @transform_0, window_bounds = array<i64: 2, 8, 32>}, {transform_indices = @transform_1, window_bounds = array<i64: 2, 32>}]} {
    %c0_i32 = arith.constant 0 : i32
    %0 = arith.cmpi eq, %arg2, %c0_i32 : i32
    %1 = arith.extui %0 : i1 to i32
    %c0_i32_0 = arith.constant 0 : i32
    %2 = arith.cmpi ne, %1, %c0_i32_0 : i32
    scf.if %2 {
      %cst_9 = arith.constant 0.000000e+00 : f32
      %11 = vector.broadcast %cst_9 : f32 to vector<2x32xf32>
      %c0_10 = arith.constant 0 : index
      %c0_11 = arith.constant 0 : index
      %12 = vector.load %arg5[%c0_10, %c0_11] : memref<2x32xf32, #tpu.memory_space<vmem>>, vector<2x32xf32>
      tpu.vector_store %arg5[%c0_10, %c0_11], %11 {strides = array<i32>} : memref<2x32xf32, #tpu.memory_space<vmem>>, vector<2x32xf32>,
    } else {
    }
    %c0 = arith.constant 0 : index
    %c0_1 = arith.constant 0 : index
    %c0_2 = arith.constant 0 : index
    %3 = vector.load %arg3[%c0, %c0_1, %c0_2] : memref<2x8x32xf32, #tpu.memory_space<vmem>>, vector<2x8x32xf32>
    %c0_3 = arith.constant 0 : index
    %c0_4 = arith.constant 0 : index
    %4 = vector.load %arg5[%c0_3, %c0_4] : memref<2x32xf32, #tpu.memory_space<vmem>>, vector<2x32xf32>
    %cst = arith.constant dense<0.000000e+00> : vector<2x32xf32>
    %5 = vector.multi_reduction <add>, %3, %cst [1] : vector<2x8x32xf32> to vector<2x32xf32>
    %6 = arith.addf %4, %5 : vector<2x32xf32>
    %c0_5 = arith.constant 0 : index
    %c0_6 = arith.constant 0 : index
    %7 = vector.load %arg5[%c0_5, %c0_6] : memref<2x32xf32, #tpu.memory_space<vmem>>, vector<2x32xf32>
    tpu.vector_store %arg5[%c0_5, %c0_6], %6 {strides = array<i32>} : memref<2x32xf32, #tpu.memory_space<vmem>>, vector<2x32xf32>,
    %c0_i32_7 = arith.constant 0 : i32
    %8 = arith.cmpi eq, %arg2, %c0_i32_7 : i32
    %9 = arith.extui %8 : i1 to i32
    %c0_i32_8 = arith.constant 0 : i32
    %10 = arith.cmpi ne, %9, %c0_i32_8 : i32
    scf.if %10 {
      %c0_9 = arith.constant 0 : index
      %c0_10 = arith.constant 0 : index
      %11 = vector.load %arg5[%c0_9, %c0_10] : memref<2x32xf32, #tpu.memory_space<vmem>>, vector<2x32xf32>
      %cst_11 = arith.constant 1.250000e-01 : f32
      %12 = vector.broadcast %cst_11 : f32 to vector<2x32xf32>
      %13 = arith.mulf %11, %12 : vector<2x32xf32>
      %c0_12 = arith.constant 0 : index
      %c0_13 = arith.constant 0 : index
      %14 = vector.load %arg4[%c0_12, %c0_13] : memref<2x32xf32, #tpu.memory_space<vmem>>, vector<2x32xf32>
      tpu.vector_store %arg4[%c0_12, %c0_13], %13 {strides = array<i32>} : memref<2x32xf32, #tpu.memory_space<vmem>>, vector<2x32xf32>,
    } else {
    }
    return
  }
  func.func @transform_0(%arg0: i32, %arg1: i32, %arg2: i32) -> (i32, i32, i32) {
    %c0_i32 = arith.constant 0 : i32
    return %arg0, %arg2, %arg1 : i32, i32, i32
  }
  func.func @transform_1(%arg0: i32, %arg1: i32, %arg2: i32) -> (i32, i32) {
    %c0_i32 = arith.constant 0 : i32
    return %arg0, %arg1 : i32, i32
  }
}

</mosaic_0001>

<llo_original>
// kernel: tpu_custom_call.1
$region0: #{tpu_custom_call.1}
  #allocation0 [shape = 'u32[]', space=smem, size = 0x4, offset = 0x4, fixed_abs, tag = 'smem constant byte address 0x4 - core index']
  #allocation1 [shape = 'u32[72,128]{1,0:T(1,128)}', space=vmem, size = 0x9000, scoped, tag = 'internal scratch']
  #allocation2 [shape = 'f32[2,32]{1,0:T(2,128)}', space=vmem, size = 0x400, scoped, tag = 'scratch operand']
  %s0 = inlined_call_operand.hbm [shape: f32[2,8,32], index: 0, kind: input, shape index: {}]
  %s1 = inlined_call_operand.hbm [shape: f32[2,32], index: 1, kind: output, shape index: {}]
  %s2 = sld [smem:[#allocation0]]
  $region26: #{tpu_custom_call.1} parent=0
    _
  %s4 = ssub.s32 1, %s2
  %s5 = scalar_select 0, %s4, %s2
  $region1: #{tpu_custom_call.1} parent=0
    #allocation3 [shape = 'u8[8192]{0}', space=vmem, size = 0x2000, scoped, tag = 'input window, operand 0, single buffered']
    #allocation4 [shape = 's32[1]{0}', space=sflag, size = 0x4, scoped, tag = 'scoped memory for tpu_custom_call.1']
    #allocation5 [shape = 's32[1]{0}', space=sflag, size = 0x4, scoped, tag = 'scoped memory for tpu_custom_call.1']
    #allocation6 [shape = 'u8[1024]{0}', space=vmem, size = 0x400, scoped, tag = 'output window, operand 0, single buffered']
    %6 = vsyncpa [#allocation4], 0
    %7 = vsyncpa [#allocation5], 0
    // Predicated region
    $region2: #{tpu_custom_call.1} parent=1 // pred_check
      _
    $region3: #{tpu_custom_call.1} parent=1 // pred_check_branch
      %9 = sbr.rel (0) target = $region5
    $region4: #{tpu_custom_call.1} parent=1 // pred_region
      %11 = vsyncadd [#allocation4], 0
      %s12 = sshll.u32 %s0, 4
      %s13 = int_to_ptr.hbm [resolvable:$true] %s12
      %s14 = sshll.u32 [#allocation3], 4
      %s15 = int_to_ptr.vmem [resolvable:$true] %s14
      %20 = dma.hbm_to_vmem [thread:$0]  %s13, 256, %s15, [#allocation4], 128, 128, 8
    $region5: #{tpu_custom_call.1} parent=1 // pred_fallthru
      _
    // Predicated region
    $region6: #{tpu_custom_call.1} parent=1 // pred_check
      _
    $region7: #{tpu_custom_call.1} parent=1 // pred_check_branch
      %22 = sbr.rel (0) target = $region9
    $region8: #{tpu_custom_call.1} parent=1 // pred_region
      %24 = dma.done [#allocation4], 256
    $region9: #{tpu_custom_call.1} parent=1 // pred_fallthru
      _
    %p25 = scmp.eq.s32.totalorder 0, 0
    // Predicated region
    $region10: #{tpu_custom_call.1} parent=1 // pred_check
      %p26 = pneg %p25
    $region11: #{tpu_custom_call.1} parent=1 // pred_check_branch
      %28 = sbr.rel (%p26) target = $region13
    $region12: #{tpu_custom_call.1} parent=1 // pred_region
      %vm29 = vcmask 254976
      %30 = vst.msk [vmem:[#allocation2] sm:$0x3] %vm29, 0.0
    $region13: #{tpu_custom_call.1} parent=1 // pred_fallthru
      _
    %v31 = vld [vmem:[#allocation3] sm:$0xff]
    %v32 = vld [vmem:[#allocation3 + $0x8] sm:$0xff]
    %v33 = vld [vmem:[#allocation2] sm:$0x3]
    %vm34 = vcmask 261120
    %v35 = vsel %vm34, %v31, 0.0
    %v36 = vrot.slane %v35, 4
    %v37 = vadd.f32 %v35, %v36
    %v38 = vrot.slane %v37, 2
    %v39 = vadd.f32 %v37, %v38
    %v40 = vrot.slane %v39, 1
    %v41 = vadd.f32 %v39, %v40
    %v42 = vsel %vm34, %v32, 0.0
    %v43 = vrot.slane %v42, 4
    %v44 = vadd.f32 %v42, %v43
    %v45 = vrot.slane %v44, 2
    %v46 = vadd.f32 %v44, %v45
    %v47 = vrot.slane %v46, 1
    %v48 = vadd.f32 %v46, %v47
    %vm51 = vcmask 1041409
    %v52 = vsel %vm51, %v48, %v41
    %v54 = vadd.f32 %v33, %v52
    %vm55 = vcmask 254976
    %56 = vst.msk [vmem:[#allocation2] sm:$0x3] %vm55, %v54
    // Predicated region
    $region14: #{tpu_custom_call.1} parent=1 // pred_check
      %p57 = pneg %p25
    $region15: #{tpu_custom_call.1} parent=1 // pred_check_branch
      %59 = sbr.rel (%p57) target = $region17
    $region16: #{tpu_custom_call.1} parent=1 // pred_region
      %v60 = vld [vmem:[#allocation2] sm:$0x3]
      %v61 = vmul.f32 %v60, 0.125
      %62 = vst.msk [vmem:[#allocation6] sm:$0x3] %vm55, %v61
    $region17: #{tpu_custom_call.1} parent=1 // pred_fallthru
      _
    // Predicated region
    $region18: #{tpu_custom_call.1} parent=1 // pred_check
      _
    $region19: #{tpu_custom_call.1} parent=1 // pred_check_branch
      %64 = sbr.rel (0) target = $region21
    $region20: #{tpu_custom_call.1} parent=1 // pred_region
      %66 = vsyncadd [#allocation5], 0
      %s68 = sshll.u32 [#allocation6], 4
      %s69 = int_to_ptr.vmem [resolvable:$true] %s68
      %s70 = sshll.u32 %s1, 4
      %s71 = int_to_ptr.hbm [resolvable:$true] %s70
      %73 = dma.vmem_to_hbm [thread:$0]  %s69, 32, %s71, [#allocation5]
    $region21: #{tpu_custom_call.1} parent=1 // pred_fallthru
      _
    // Predicated region
    $region22: #{tpu_custom_call.1} parent=1 // pred_check
      _
    $region23: #{tpu_custom_call.1} parent=1 // pred_check_branch
      %75 = sbr.rel (0) target = $region25
    $region24: #{tpu_custom_call.1} parent=1 // pred_region
      %77 = dma.done [#allocation5], 32
    $region25: #{tpu_custom_call.1} parent=1 // pred_fallthru
      _
    %78 = vsyncpa [#allocation4], 1
    %79 = vsyncpa [#allocation5], 1

</llo_original>
